<compile_context>
chip_gen: v7x
topology: tpu7x:2x2x1
jax: 0.10.0
libtpu: 0.0.40
codegen_flags: <defaults>
</compile_context>

<pallas_src>
import jax
import jax.numpy as jnp
from jax.experimental import pallas as pl
from jax.experimental.pallas import tpu as pltpu


def _round_up(a, b):
    return (a + b - 1) // b * b


# ---------------------------------------------------------------------------
# Pallas kernel: fused 3-layer MLP (bias-free) + ReLU + sigmoid color activation
# ---------------------------------------------------------------------------
def _volume_color_kernel(x_ref, w1_ref, w2_ref, w3_ref, o_ref):
    # x_ref : (TM, C_in)   bf16 tile of flattened features
    # w1_ref: (C_in, H)    bf16 full weight (VMEM resident)
    # w2_ref: (H, H)       bf16
    # w3_ref: (H, 3)       bf16
    # o_ref : (3, TM)      f32 lane-dense output tile
    h = jnp.dot(x_ref[...], w1_ref[...], preferred_element_type=jnp.float32)
    h = jnp.maximum(h, 0.0).astype(jnp.bfloat16)          # ReLU in f32, bf16 for MXU
    h = jnp.dot(h, w2_ref[...], preferred_element_type=jnp.float32)
    h = jnp.maximum(h, 0.0).astype(jnp.bfloat16)
    # Lane-dense final layer: contract W3 (H, 3) dim 0 with h (TM, H) dim 1
    # -> (3, TM), so the output's last (lane) dim is the big row dimension.
    y = jax.lax.dot_general(
        w3_ref[...], h,
        dimension_numbers=(((0,), (1,)), ((), ())),
        preferred_element_type=jnp.float32,
    )
    # color_activation = 'sigmoid'
    o_ref[...] = jax.nn.sigmoid(y).astype(o_ref.dtype)


def volume_color_forward(features, w1, w2, w3, *, tm=2048):
    """features: (..., C_in) float32 -> (..., 3) float32."""
    c_in = features.shape[-1]
    lead_shape = features.shape[:-1]
    x = features.reshape(-1, c_in)
    n = x.shape[0]

    hdim = w1.shape[1]
    out_dim = w3.shape[1]

    # bf16 operands for the MXU (f32 accumulation inside the kernel).
    x = x.astype(jnp.bfloat16)
    w1 = w1.astype(jnp.bfloat16)
    w2 = w2.astype(jnp.bfloat16)
    w3 = w3.astype(jnp.bfloat16)

    # Clamp the row tile to the problem size (kept a multiple of 512 so the
    # sublane (8) / lane (128) block constraints always hold); no explicit
    # zero-padding of x — the ragged tail is a Pallas edge block.
    tm_eff = min(tm, _round_up(n, 512))
    grid = (pl.cdiv(n, tm_eff),)

    out_t = pl.pallas_call(
        _volume_color_kernel,
        out_shape=jax.ShapeDtypeStruct((out_dim, n), jnp.float32),
        grid_spec=pltpu.PrefetchScalarGridSpec(
            num_scalar_prefetch=0,
            grid=grid,
            in_specs=[
                pl.BlockSpec((tm_eff, c_in), lambda i: (i, 0)),
                pl.BlockSpec((c_in, hdim), lambda i: (0, 0)),
                pl.BlockSpec((hdim, hdim), lambda i: (0, 0)),
                pl.BlockSpec((hdim, out_dim), lambda i: (0, 0)),
            ],
            out_specs=pl.BlockSpec((out_dim, tm_eff), lambda i: (0, i)),
        ),
        compiler_params=pltpu.CompilerParams(
            dimension_semantics=("parallel",),
        ),
    )(x, w1, w2, w3)

    # (3, N) -> (N, 3) -> (..., 3)
    out = out_t.T
    return out.reshape(*lead_shape, out_dim).astype(jnp.float32)


# ---------------------------------------------------------------------------
# Deterministic parameter construction (synthetic; shapes from module config:
# input_feature_dim=C_in, mlp n_neurons=H, n_hidden_layers=2, dim_out=3)
# ---------------------------------------------------------------------------
def init_params(key, c_in, hidden, out_dim=3):
    k1, k2, k3 = jax.random.split(key, 3)
    # Kaiming-uniform-ish scale, stored as (in, out) for row-major matmul.
    w1 = jax.random.uniform(k1, (c_in, hidden), jnp.float32, -1.0, 1.0) / jnp.sqrt(c_in)
    w2 = jax.random.uniform(k2, (hidden, hidden), jnp.float32, -1.0, 1.0) / jnp.sqrt(hidden)
    w3 = jax.random.uniform(k3, (hidden, out_dim), jnp.float32, -1.0, 1.0) / jnp.sqrt(hidden)
    return w1, w2, w3


if __name__ == "__main__":
    key = jax.random.PRNGKey(0)
    kf, kp = jax.random.split(key)

    # Small config consistent with the forward pass:
    #   input_feature_dim = 16, hidden = 64, output = 3 (RGB)
    C_IN, HIDDEN = 16, 64
    B, H, W = 2, 16, 16  # features over a ray/pixel grid: (B, H, W, C_in)

    features = jax.random.normal(kf, (B, H, W, C_IN), jnp.float32)
    w1, w2, w3 = init_params(kp, C_IN, HIDDEN)

    color = volume_color_forward(features, w1, w2, w3)
    color = jax.block_until_ready(color)

    # Reference check in plain JAX (f32 math); kernel runs bf16 matmuls with
    # f32 accumulation, so allow a modest tolerance.
    x = features.reshape(-1, C_IN)
    ref = jax.nn.sigmoid(
        jnp.maximum(jnp.maximum(x @ w1, 0.0) @ w2, 0.0) @ w3
    ).reshape(B, H, W, 3)
    assert color.shape == (B, H, W, 3)
    assert color.dtype == jnp.float32
    assert jnp.allclose(color, ref, atol=2e-2, rtol=2e-2)

    print("KERNEL_OK")
</pallas_src>

<mosaic_0001>
module attributes {stable_mosaic.version = 11 : i64} {
  func.func @_volume_color_kernel(%arg0: i32, %arg1: memref<512x16xbf16, #tpu.memory_space<vmem>>, %arg2: memref<16x64xbf16, #tpu.memory_space<vmem>>, %arg3: memref<64x64xbf16, #tpu.memory_space<vmem>>, %arg4: memref<64x3xbf16, #tpu.memory_space<vmem>>, %arg5: memref<3x512xf32, #tpu.memory_space<vmem>>) attributes {dimension_semantics = [#tpu.dimension_semantics<parallel>], iteration_bounds = array<i64: 1>, scalar_prefetch = 0 : i64, scratch_operands = 0 : i64, tpu.core_type = #tpu.core_type<tc>, window_params = [{transform_indices = @transform_0, window_bounds = array<i64: 512, 16>}, {pipeline_mode = #tpu.pipeline_mode<synchronous>, transform_indices = @transform_1, window_bounds = array<i64: 16, 64>}, {pipeline_mode = #tpu.pipeline_mode<synchronous>, transform_indices = @transform_2, window_bounds = array<i64: 64, 64>}, {pipeline_mode = #tpu.pipeline_mode<synchronous>, transform_indices = @transform_3, window_bounds = array<i64: 64, 3>}, {transform_indices = @transform_4, window_bounds = array<i64: 3, 512>}]} {
    %c0 = arith.constant 0 : index
    %c0_0 = arith.constant 0 : index
    %0 = vector.load %arg1[%c0, %c0_0] : memref<512x16xbf16, #tpu.memory_space<vmem>>, vector<512x16xbf16>
    %c0_1 = arith.constant 0 : index
    %c0_2 = arith.constant 0 : index
    %1 = vector.load %arg2[%c0_1, %c0_2] : memref<16x64xbf16, #tpu.memory_space<vmem>>, vector<16x64xbf16>
    %cst = arith.constant dense<0.000000e+00> : vector<512x64xf32>
    %2 = tpu.matmul %0, %1, %cst {dimension_numbers = #tpu.dot_dimension_numbers<[1], [0], [0], [1], [0, 0, 1, 1], [], []>} : vector<512x16xbf16>, vector<16x64xbf16>, vector<512x64xf32> -> vector<512x64xf32>
    %cst_3 = arith.constant 0.000000e+00 : f32
    %3 = vector.broadcast %cst_3 : f32 to vector<512x64xf32>
    %4 = arith.maximumf %2, %3 : vector<512x64xf32>
    %5 = arith.truncf %4 : vector<512x64xf32> to vector<512x64xbf16>
    %c0_4 = arith.constant 0 : index
    %c0_5 = arith.constant 0 : index
    %6 = vector.load %arg3[%c0_4, %c0_5] : memref<64x64xbf16, #tpu.memory_space<vmem>>, vector<64x64xbf16>
    %cst_6 = arith.constant dense<0.000000e+00> : vector<512x64xf32>
    %7 = tpu.matmul %5, %6, %cst_6 {dimension_numbers = #tpu.dot_dimension_numbers<[1], [0], [0], [1], [0, 0, 1, 1], [], []>} : vector<512x64xbf16>, vector<64x64xbf16>, vector<512x64xf32> -> vector<512x64xf32>
    %cst_7 = arith.constant 0.000000e+00 : f32
    %8 = vector.broadcast %cst_7 : f32 to vector<512x64xf32>
    %9 = arith.maximumf %7, %8 : vector<512x64xf32>
    %10 = arith.truncf %9 : vector<512x64xf32> to vector<512x64xbf16>
    %c0_8 = arith.constant 0 : index
    %c0_9 = arith.constant 0 : index
    %11 = vector.load %arg4[%c0_8, %c0_9] : memref<64x3xbf16, #tpu.memory_space<vmem>>, vector<64x3xbf16>
    %cst_10 = arith.constant dense<0.000000e+00> : vector<3x512xf32>
    %12 = tpu.matmul %11, %10, %cst_10 {dimension_numbers = #tpu.dot_dimension_numbers<[0], [1], [1], [0], [0, 1, 1, 0], [], []>} : vector<64x3xbf16>, vector<512x64xbf16>, vector<3x512xf32> -> vector<3x512xf32>
    %13 = arith.negf %12 : vector<3x512xf32>
    %14 = math.exp %13 : vector<3x512xf32>
    %cst_11 = arith.constant 1.000000e+00 : f32
    %15 = vector.broadcast %cst_11 : f32 to vector<3x512xf32>
    %16 = arith.addf %15, %14 : vector<3x512xf32>
    %17 = arith.divf %15, %16 : vector<3x512xf32>
    %c0_12 = arith.constant 0 : index
    %c0_13 = arith.constant 0 : index
    %18 = vector.load %arg5[%c0_12, %c0_13] : memref<3x512xf32, #tpu.memory_space<vmem>>, vector<3x512xf32>
    tpu.vector_store %arg5[%c0_12, %c0_13], %17 {strides = array<i32>} : memref<3x512xf32, #tpu.memory_space<vmem>>, vector<3x512xf32>,
    return
  }
  func.func @transform_0(%arg0: i32) -> (i32, i32) {
    %c0_i32 = arith.constant 0 : i32
    %c0_i32_0 = arith.constant 0 : i32
    return %arg0, %c0_i32 : i32, i32
  }
  func.func @transform_1(%arg0: i32) -> (i32, i32) {
    %c0_i32 = arith.constant 0 : i32
    %c0_i32_0 = arith.constant 0 : i32
    %c0_i32_1 = arith.constant 0 : i32
    return %c0_i32, %c0_i32_0 : i32, i32
  }
  func.func @transform_2(%arg0: i32) -> (i32, i32) {
    %c0_i32 = arith.constant 0 : i32
    %c0_i32_0 = arith.constant 0 : i32
    %c0_i32_1 = arith.constant 0 : i32
    return %c0_i32, %c0_i32_0 : i32, i32
  }
  func.func @transform_3(%arg0: i32) -> (i32, i32) {
    %c0_i32 = arith.constant 0 : i32
    %c0_i32_0 = arith.constant 0 : i32
    %c0_i32_1 = arith.constant 0 : i32
    return %c0_i32, %c0_i32_0 : i32, i32
  }
  func.func @transform_4(%arg0: i32) -> (i32, i32) {
    %c0_i32 = arith.constant 0 : i32
    %c0_i32_0 = arith.constant 0 : i32
    return %c0_i32, %arg0 : i32, i32
  }
}

</mosaic_0001>

<llo_original>
// kernel: tpu_custom_call.1
$region0: #{tpu_custom_call.1}
  #allocation0 [shape = 'u32[]', space=smem, size = 0x4, offset = 0x4, fixed_abs, tag = 'smem constant byte address 0x4 - core index']
  #allocation1 [shape = 'u32[144,128]{1,0:T(1,128)}', space=vmem, size = 0x12000, scoped, tag = 'internal scratch']
  %s0 = inlined_call_operand.vmem [shape: bf16[512,16], index: 0, kind: input, shape index: {}]
  %s1 = inlined_call_operand.vmem [shape: bf16[16,64], index: 1, kind: input, shape index: {}]
  %s2 = inlined_call_operand.vmem [shape: bf16[64,64], index: 2, kind: input, shape index: {}]
  %s3 = inlined_call_operand.vmem [shape: bf16[64,3], index: 3, kind: input, shape index: {}]
  %s4 = inlined_call_operand.hbm [shape: f32[3,512], index: 4, kind: output, shape index: {}]
  %s5 = sld [smem:[#allocation0]]
  $region26: #{tpu_custom_call.1} parent=0
    _
  %s7 = ssub.s32 1, %s5
  %s8 = scalar_select 0, %s7, %s5
  $region1: #{tpu_custom_call.1} parent=0
    #allocation2 [shape = 'u8[8192]{0}', space=vmem, size = 0x2000, scoped, tag = 'output window, operand 0, single buffered']
    #allocation3 [shape = 's32[1]{0}', space=sflag, size = 0x4, scoped, tag = 'scoped memory for tpu_custom_call.1']
    %9 = vsyncpa [#allocation3], 0
    // Predicated region
    $region2: #{tpu_custom_call.1} parent=1 // pred_check
      _
    $region3: #{tpu_custom_call.1} parent=1 // pred_check_branch
      %11 = sbr.rel (0) target = $region5
    $region4: #{tpu_custom_call.1} parent=1 // pred_region
      _
    $region5: #{tpu_custom_call.1} parent=1 // pred_fallthru
      _
    // Predicated region
    $region6: #{tpu_custom_call.1} parent=1 // pred_check
      _
    $region7: #{tpu_custom_call.1} parent=1 // pred_check_branch
      %13 = sbr.rel (0) target = $region9
    $region8: #{tpu_custom_call.1} parent=1 // pred_region
      _
    $region9: #{tpu_custom_call.1} parent=1 // pred_fallthru
      _
    // Predicated region
    $region10: #{tpu_custom_call.1} parent=1 // pred_check
      _
    $region11: #{tpu_custom_call.1} parent=1 // pred_check_branch
      %15 = sbr.rel (0) target = $region13
    $region12: #{tpu_custom_call.1} parent=1 // pred_region
      _
    $region13: #{tpu_custom_call.1} parent=1 // pred_fallthru
      _
    // Predicated region
    $region14: #{tpu_custom_call.1} parent=1 // pred_check
      _
    $region15: #{tpu_custom_call.1} parent=1 // pred_check_branch
      %17 = sbr.rel (0) target = $region17
    $region16: #{tpu_custom_call.1} parent=1 // pred_region
      _
    $region17: #{tpu_custom_call.1} parent=1 // pred_fallthru
      _
    %v19 = vld [vmem:[%s0] sm:$0xf]
    %v20 = vld [vmem:[%s0 + $0x4] sm:$0xf]
    %v21 = vld [vmem:[%s0 + $0x8] sm:$0xf]
    %v22 = vld [vmem:[%s0 + $0xc] sm:$0xf]
    %v23 = vld [vmem:[%s0 + $0x10] sm:$0xf]
    %v24 = vld [vmem:[%s0 + $0x14] sm:$0xf]
    %v25 = vld [vmem:[%s0 + $0x18] sm:$0xf]
    %v26 = vld [vmem:[%s0 + $0x1c] sm:$0xf]
    %v27 = vld [vmem:[%s0 + $0x20] sm:$0xf]
    %v28 = vld [vmem:[%s0 + $0x24] sm:$0xf]
    %v29 = vld [vmem:[%s0 + $0x28] sm:$0xf]
    %v30 = vld [vmem:[%s0 + $0x2c] sm:$0xf]
    %v31 = vld [vmem:[%s0 + $0x30] sm:$0xf]
    %v32 = vld [vmem:[%s0 + $0x34] sm:$0xf]
    %v33 = vld [vmem:[%s0 + $0x38] sm:$0xf]
    %v34 = vld [vmem:[%s0 + $0x3c] sm:$0xf]
    %v35 = vld [vmem:[%s0 + $0x40] sm:$0xf]
    %v36 = vld [vmem:[%s0 + $0x44] sm:$0xf]
    %v37 = vld [vmem:[%s0 + $0x48] sm:$0xf]
    %v38 = vld [vmem:[%s0 + $0x4c] sm:$0xf]
    %v39 = vld [vmem:[%s0 + $0x50] sm:$0xf]
    %v40 = vld [vmem:[%s0 + $0x54] sm:$0xf]
    %v41 = vld [vmem:[%s0 + $0x58] sm:$0xf]
    %v42 = vld [vmem:[%s0 + $0x5c] sm:$0xf]
    %v43 = vld [vmem:[%s0 + $0x60] sm:$0xf]
    %v44 = vld [vmem:[%s0 + $0x64] sm:$0xf]
    %v45 = vld [vmem:[%s0 + $0x68] sm:$0xf]
    %v46 = vld [vmem:[%s0 + $0x6c] sm:$0xf]
    %v47 = vld [vmem:[%s0 + $0x70] sm:$0xf]
    %v48 = vld [vmem:[%s0 + $0x74] sm:$0xf]
    %v49 = vld [vmem:[%s0 + $0x78] sm:$0xf]
    %v50 = vld [vmem:[%s0 + $0x7c] sm:$0xf]
    %v51 = vld [vmem:[%s0 + $0x80] sm:$0xf]
    %v52 = vld [vmem:[%s0 + $0x84] sm:$0xf]
    %v53 = vld [vmem:[%s0 + $0x88] sm:$0xf]
    %v54 = vld [vmem:[%s0 + $0x8c] sm:$0xf]
    %v55 = vld [vmem:[%s0 + $0x90] sm:$0xf]
    %v56 = vld [vmem:[%s0 + $0x94] sm:$0xf]
    %v57 = vld [vmem:[%s0 + $0x98] sm:$0xf]
    %v58 = vld [vmem:[%s0 + $0x9c] sm:$0xf]
    %v59 = vld [vmem:[%s0 + $0xa0] sm:$0xf]
    %v60 = vld [vmem:[%s0 + $0xa4] sm:$0xf]
    %v61 = vld [vmem:[%s0 + $0xa8] sm:$0xf]
    %v62 = vld [vmem:[%s0 + $0xac] sm:$0xf]
    %v63 = vld [vmem:[%s0 + $0xb0] sm:$0xf]
    %v64 = vld [vmem:[%s0 + $0xb4] sm:$0xf]
    %v65 = vld [vmem:[%s0 + $0xb8] sm:$0xf]
    %v66 = vld [vmem:[%s0 + $0xbc] sm:$0xf]
    %v67 = vld [vmem:[%s0 + $0xc0] sm:$0xf]
    %v68 = vld [vmem:[%s0 + $0xc4] sm:$0xf]
    %v69 = vld [vmem:[%s0 + $0xc8] sm:$0xf]
    %v70 = vld [vmem:[%s0 + $0xcc] sm:$0xf]
    %v71 = vld [vmem:[%s0 + $0xd0] sm:$0xf]
    %v72 = vld [vmem:[%s0 + $0xd4] sm:$0xf]
    %v73 = vld [vmem:[%s0 + $0xd8] sm:$0xf]
    %v74 = vld [vmem:[%s0 + $0xdc] sm:$0xf]
    %v75 = vld [vmem:[%s0 + $0xe0] sm:$0xf]
    %v76 = vld [vmem:[%s0 + $0xe4] sm:$0xf]
    %v77 = vld [vmem:[%s0 + $0xe8] sm:$0xf]
    %v78 = vld [vmem:[%s0 + $0xec] sm:$0xf]
    %v79 = vld [vmem:[%s0 + $0xf0] sm:$0xf]
    %v80 = vld [vmem:[%s0 + $0xf4] sm:$0xf]
    %v81 = vld [vmem:[%s0 + $0xf8] sm:$0xf]
    %v82 = vld [vmem:[%s0 + $0xfc] sm:$0xf]
    %v83 = vld [vmem:[%s1] sm:$0xf]
    %v84 = vld [vmem:[%s1 + $0x4] sm:$0xf]
    %v149 = vunpack.c.l.b16 %v19
    %v150 = vunpack.c.l.b16 %v20
    %v151 = vunpack.c.l.b16 %v21
    %v152 = vunpack.c.l.b16 %v22
    %v153 = vunpack.c.l.b16 %v23
    %v154 = vunpack.c.l.b16 %v24
    %v155 = vunpack.c.l.b16 %v25
    %v156 = vunpack.c.l.b16 %v26
    %v157 = vunpack.c.l.b16 %v27
    %v158 = vunpack.c.l.b16 %v28
    %v159 = vunpack.c.l.b16 %v29
    %v160 = vunpack.c.l.b16 %v30
    %v161 = vunpack.c.l.b16 %v31
    %v162 = vunpack.c.l.b16 %v32
    %v163 = vunpack.c.l.b16 %v33
    %v164 = vunpack.c.l.b16 %v34
    %v165 = vunpack.c.l.b16 %v35
    %v166 = vunpack.c.l.b16 %v36
    %v167 = vunpack.c.l.b16 %v37
    %v168 = vunpack.c.l.b16 %v38
    %v169 = vunpack.c.l.b16 %v39
    %v170 = vunpack.c.l.b16 %v40
    %v171 = vunpack.c.l.b16 %v41
    %v172 = vunpack.c.l.b16 %v42
    %v173 = vunpack.c.l.b16 %v43
    %v174 = vunpack.c.l.b16 %v44
    %v175 = vunpack.c.l.b16 %v45
    %v176 = vunpack.c.l.b16 %v46
    %v177 = vunpack.c.l.b16 %v47
    %v178 = vunpack.c.l.b16 %v48
    %v179 = vunpack.c.l.b16 %v49
    %v180 = vunpack.c.l.b16 %v50
    %v181 = vunpack.c.l.b16 %v51
    %v182 = vunpack.c.l.b16 %v52
    %v183 = vunpack.c.l.b16 %v53
    %v184 = vunpack.c.l.b16 %v54
    %v185 = vunpack.c.l.b16 %v55
    %v186 = vunpack.c.l.b16 %v56
    %v187 = vunpack.c.l.b16 %v57
    %v188 = vunpack.c.l.b16 %v58
    %v189 = vunpack.c.l.b16 %v59
    %v190 = vunpack.c.l.b16 %v60
    %v191 = vunpack.c.l.b16 %v61
    %v192 = vunpack.c.l.b16 %v62
    %v193 = vunpack.c.l.b16 %v63
    %v194 = vunpack.c.l.b16 %v64
    %v195 = vunpack.c.l.b16 %v65
    %v196 = vunpack.c.l.b16 %v66
    %v197 = vunpack.c.l.b16 %v67
    %v198 = vunpack.c.l.b16 %v68
    %v199 = vunpack.c.l.b16 %v69
    %v200 = vunpack.c.l.b16 %v70
    %v201 = vunpack.c.l.b16 %v71
    %v202 = vunpack.c.l.b16 %v72
    %v203 = vunpack.c.l.b16 %v73
    %v204 = vunpack.c.l.b16 %v74
    %v205 = vunpack.c.l.b16 %v75
    %v206 = vunpack.c.l.b16 %v76
    %v207 = vunpack.c.l.b16 %v77
    %v208 = vunpack.c.l.b16 %v78
    %v209 = vunpack.c.l.b16 %v79
    %v210 = vunpack.c.l.b16 %v80
    %v211 = vunpack.c.l.b16 %v81
    %v212 = vunpack.c.l.b16 %v82
    %v213 = vpack.c.b16 %v150, %v149
    %v214 = vpack.c.b16 %v152, %v151
    %v215 = vpack.c.b16 %v154, %v153
    %v216 = vpack.c.b16 %v156, %v155
    %v217 = vpack.c.b16 %v158, %v157
    %v218 = vpack.c.b16 %v160, %v159
    %v219 = vpack.c.b16 %v162, %v161
    %v220 = vpack.c.b16 %v164, %v163
    %v221 = vpack.c.b16 %v166, %v165
    %v222 = vpack.c.b16 %v168, %v167
    %v223 = vpack.c.b16 %v170, %v169
    %v224 = vpack.c.b16 %v172, %v171
    %v225 = vpack.c.b16 %v174, %v173
    %v226 = vpack.c.b16 %v176, %v175
    %v227 = vpack.c.b16 %v178, %v177
    %v228 = vpack.c.b16 %v180, %v179
    %v229 = vpack.c.b16 %v182, %v181
    %v230 = vpack.c.b16 %v184, %v183
    %v231 = vpack.c.b16 %v186, %v185
    %v232 = vpack.c.b16 %v188, %v187
    %v233 = vpack.c.b16 %v190, %v189
    %v234 = vpack.c.b16 %v192, %v191
    %v235 = vpack.c.b16 %v194, %v193
    %v236 = vpack.c.b16 %v196, %v195
    %v237 = vpack.c.b16 %v198, %v197
    %v238 = vpack.c.b16 %v200, %v199
    %v239 = vpack.c.b16 %v202, %v201
    %v240 = vpack.c.b16 %v204, %v203
    %v241 = vpack.c.b16 %v206, %v205
    %v242 = vpack.c.b16 %v208, %v207
    %v243 = vpack.c.b16 %v210, %v209
    %v244 = vpack.c.b16 %v212, %v211
    %v247 = vunpack.c.l.b16 %v83
    %v248 = vunpack.c.l.b16 %v84
    %v249 = vpack.c.b16 %v248, %v247
    %vm251 = vcmask 130048
    %v253 = vsel %vm251, %v213, 0
    %v256 = vsel %vm251, %v214, 0
    %v259 = vsel %vm251, %v215, 0
    %v262 = vsel %vm251, %v216, 0
    %v265 = vsel %vm251, %v217, 0
    %v268 = vsel %vm251, %v218, 0
    %v271 = vsel %vm251, %v219, 0
    %v274 = vsel %vm251, %v220, 0
    %v277 = vsel %vm251, %v221, 0
    %v280 = vsel %vm251, %v222, 0
    %v283 = vsel %vm251, %v223, 0
    %v286 = vsel %vm251, %v224, 0
    %v289 = vsel %vm251, %v225, 0
    %v292 = vsel %vm251, %v226, 0
    %v295 = vsel %vm251, %v227, 0
    %v298 = vsel %vm251, %v228, 0
    %v301 = vsel %vm251, %v229, 0
    %v304 = vsel %vm251, %v230, 0
    %v307 = vsel %vm251, %v231, 0
    %v310 = vsel %vm251, %v232, 0
    %v313 = vsel %vm251, %v233, 0
    %v316 = vsel %vm251, %v234, 0
    %v319 = vsel %vm251, %v235, 0
    %v322 = vsel %vm251, %v236, 0
    %v325 = vsel %vm251, %v237, 0
    %v328 = vsel %vm251, %v238, 0
    %v331 = vsel %vm251, %v239, 0
    %v334 = vsel %vm251, %v240, 0
    %v337 = vsel %vm251, %v241, 0
    %v340 = vsel %vm251, %v242, 0
    %v343 = vsel %vm251, %v243, 0
    %v346 = vsel %vm251, %v244, 0
    %348 = vmatprep.subr.bf16.mxu0 0
    %349 = vmatpush1.bf16.msra.mxu0 %v249
    %350 = vmatprep.subr.bf16.mxu0 0
    %351 = vmatpush1.bf16.msra.mxu0 0
    %352 = vmatprep.subr.bf16.mxu0 0
    %353 = vmatpush1.bf16.msra.mxu0 0
    %354 = vmatprep.subr.bf16.mxu0 0
    %355 = vmatpush1.bf16.msra.mxu0 0
    %356 = vmatprep.subr.bf16.mxu0 0
    %357 = vmatpush1.bf16.msra.mxu0 0
    %358 = vmatprep.subr.bf16.mxu0 0
    %359 = vmatpush1.bf16.msra.mxu0 0
    %360 = vmatprep.subr.bf16.mxu0 0
    %361 = vmatpush1.bf16.msra.mxu0 0
    %362 = vmatprep.subr.bf16.mxu0 0
    %363 = vmatpush1.bf16.msra.mxu0 0
    %364 = vmatprep.subr.bf16.mxu0 0
    %365 = vmatpush1.bf16.msra.mxu0 0
    %366 = vmatprep.subr.bf16.mxu0 0
    %367 = vmatpush1.bf16.msra.mxu0 0
    %368 = vmatprep.subr.bf16.mxu0 0
    %369 = vmatpush1.bf16.msra.mxu0 0
    %370 = vmatprep.subr.bf16.mxu0 0
    %371 = vmatpush1.bf16.msra.mxu0 0
    %372 = vmatprep.subr.bf16.mxu0 0
    %373 = vmatpush1.bf16.msra.mxu0 0
    %374 = vmatprep.subr.bf16.mxu0 0
    %375 = vmatpush1.bf16.msra.mxu0 0
    %376 = vmatprep.subr.bf16.mxu0 0
    %377 = vmatpush1.bf16.msra.mxu0 0
    %378 = vmatprep.subr.bf16.mxu0 0
    %379 = vmatpush1.bf16.msra.mxu0 0
    %380 = vmatprep.mubr.bf16.mxu0 0
    %381 = vmatmul.mubr.bf16.gmra.mrb[0].mxu0 %v253
    %v382 = vpop.f32.mrb[0].mxu0
    %v383 = vadd.f32 0.0, %v382
    %v384 = vpop.f32.mrb[0].mxu0
    %v385 = vpop.f32.mrb[0].mxu0
    %v386 = vadd.f32 0.0, %v385
    %v387 = vpop.f32.mrb[0].mxu0
    %388 = vmatprep.mubr.bf16.mxu0 0
    %389 = vmatmul.mubr.bf16.gmra.mrb[0].mxu0 %v256
    %v390 = vpop.f32.mrb[0].mxu0
    %v391 = vadd.f32 0.0, %v390
    %v392 = vpop.f32.mrb[0].mxu0
    %v393 = vpop.f32.mrb[0].mxu0
    %v394 = vadd.f32 0.0, %v393
    %v395 = vpop.f32.mrb[0].mxu0
    %396 = vmatprep.mubr.bf16.mxu0 0
    %397 = vmatmul.mubr.bf16.gmra.mrb[0].mxu0 %v259
    %v398 = vpop.f32.mrb[0].mxu0
    %v399 = vadd.f32 0.0, %v398
    %v400 = vpop.f32.mrb[0].mxu0
    %v401 = vpop.f32.mrb[0].mxu0
    %v402 = vadd.f32 0.0, %v401
    %v403 = vpop.f32.mrb[0].mxu0
    %404 = vmatprep.mubr.bf16.mxu0 0
    %405 = vmatmul.mubr.bf16.gmra.mrb[0].mxu0 %v262
    %v406 = vpop.f32.mrb[0].mxu0
    %v407 = vadd.f32 0.0, %v406
    %v408 = vpop.f32.mrb[0].mxu0
    %v409 = vpop.f32.mrb[0].mxu0
    %v410 = vadd.f32 0.0, %v409
    %v411 = vpop.f32.mrb[0].mxu0
    %412 = vmatprep.mubr.bf16.mxu0 0
    %413 = vmatmul.mubr.bf16.gmra.mrb[0].mxu0 %v265
    %v414 = vpop.f32.mrb[0].mxu0
    %v415 = vadd.f32 0.0, %v414
    %v416 = vpop.f32.mrb[0].mxu0
    %v417 = vpop.f32.mrb[0].mxu0
    %v418 = vadd.f32 0.0, %v417
    %v419 = vpop.f32.mrb[0].mxu0
    %420 = vmatprep.mubr.bf16.mxu0 0
    %421 = vmatmul.mubr.bf16.gmra.mrb[0].mxu0 %v268
    %v422 = vpop.f32.mrb[0].mxu0
    %v423 = vadd.f32 0.0, %v422
    %v424 = vpop.f32.mrb[0].mxu0
    %v425 = vpop.f32.mrb[0].mxu0
    %v426 = vadd.f32 0.0, %v425
    %v427 = vpop.f32.mrb[0].mxu0
    %428 = vmatprep.mubr.bf16.mxu0 0
    %429 = vmatmul.mubr.bf16.gmra.mrb[0].mxu0 %v271
    %v430 = vpop.f32.mrb[0].mxu0
    %v431 = vadd.f32 0.0, %v430
    %v432 = vpop.f32.mrb[0].mxu0
    %v433 = vpop.f32.mrb[0].mxu0
    %v434 = vadd.f32 0.0, %v433
    %v435 = vpop.f32.mrb[0].mxu0
    %436 = vmatprep.mubr.bf16.mxu0 0
    %437 = vmatmul.mubr.bf16.gmra.mrb[0].mxu0 %v274
    %v438 = vpop.f32.mrb[0].mxu0
    %v439 = vadd.f32 0.0, %v438
    %v440 = vpop.f32.mrb[0].mxu0
    %v441 = vpop.f32.mrb[0].mxu0
    %v442 = vadd.f32 0.0, %v441
    %v443 = vpop.f32.mrb[0].mxu0
    %444 = vmatprep.mubr.bf16.mxu0 0
    %445 = vmatmul.mubr.bf16.gmra.mrb[0].mxu0 %v277
    %v446 = vpop.f32.mrb[0].mxu0
    %v447 = vadd.f32 0.0, %v446
    %v448 = vpop.f32.mrb[0].mxu0
    %v449 = vpop.f32.mrb[0].mxu0
    %v450 = vadd.f32 0.0, %v449
    %v451 = vpop.f32.mrb[0].mxu0
    %452 = vmatprep.mubr.bf16.mxu0 0
    %453 = vmatmul.mubr.bf16.gmra.mrb[0].mxu0 %v280
    %v454 = vpop.f32.mrb[0].mxu0
    %v455 = vadd.f32 0.0, %v454
    %v456 = vpop.f32.mrb[0].mxu0
    %v457 = vpop.f32.mrb[0].mxu0
    %v458 = vadd.f32 0.0, %v457
    %v459 = vpop.f32.mrb[0].mxu0
    %460 = vmatprep.mubr.bf16.mxu0 0
    %461 = vmatmul.mubr.bf16.gmra.mrb[0].mxu0 %v283
    %v462 = vpop.f32.mrb[0].mxu0
    %v463 = vadd.f32 0.0, %v462
    %v464 = vpop.f32.mrb[0].mxu0
    %v465 = vpop.f32.mrb[0].mxu0
    %v466 = vadd.f32 0.0, %v465
    %v467 = vpop.f32.mrb[0].mxu0
    %468 = vmatprep.mubr.bf16.mxu0 0
    %469 = vmatmul.mubr.bf16.gmra.mrb[0].mxu0 %v286
    %v470 = vpop.f32.mrb[0].mxu0
    %v471 = vadd.f32 0.0, %v470
    %v472 = vpop.f32.mrb[0].mxu0
    %v473 = vpop.f32.mrb[0].mxu0
    %v474 = vadd.f32 0.0, %v473
    %v475 = vpop.f32.mrb[0].mxu0
    %476 = vmatprep.mubr.bf16.mxu0 0
    %477 = vmatmul.mubr.bf16.gmra.mrb[0].mxu0 %v289
    %v478 = vpop.f32.mrb[0].mxu0
    %v479 = vadd.f32 0.0, %v478
    %v480 = vpop.f32.mrb[0].mxu0
    %v481 = vpop.f32.mrb[0].mxu0
    %v482 = vadd.f32 0.0, %v481
    %v483 = vpop.f32.mrb[0].mxu0
    %484 = vmatprep.mubr.bf16.mxu0 0
    %485 = vmatmul.mubr.bf16.gmra.mrb[0].mxu0 %v292
    %v486 = vpop.f32.mrb[0].mxu0
    %v487 = vadd.f32 0.0, %v486
    %v488 = vpop.f32.mrb[0].mxu0
    %v489 = vpop.f32.mrb[0].mxu0
    %v490 = vadd.f32 0.0, %v489
    %v491 = vpop.f32.mrb[0].mxu0
    %492 = vmatprep.mubr.bf16.mxu0 0
    %493 = vmatmul.mubr.bf16.gmra.mrb[0].mxu0 %v295
    %v494 = vpop.f32.mrb[0].mxu0
    %v495 = vadd.f32 0.0, %v494
    %v496 = vpop.f32.mrb[0].mxu0
    %v497 = vpop.f32.mrb[0].mxu0
    %v498 = vadd.f32 0.0, %v497
    %v499 = vpop.f32.mrb[0].mxu0
    %500 = vmatprep.mubr.bf16.mxu0 0
    %501 = vmatmul.mubr.bf16.gmra.mrb[0].mxu0 %v298
    %v502 = vpop.f32.mrb[0].mxu0
    %v503 = vadd.f32 0.0, %v502
    %v504 = vpop.f32.mrb[0].mxu0
    %v505 = vpop.f32.mrb[0].mxu0
    %v506 = vadd.f32 0.0, %v505
    %v507 = vpop.f32.mrb[0].mxu0
    %508 = vmatprep.mubr.bf16.mxu0 0
    %509 = vmatmul.mubr.bf16.gmra.mrb[0].mxu0 %v301
    %v510 = vpop.f32.mrb[0].mxu0
    %v511 = vadd.f32 0.0, %v510
    %v512 = vpop.f32.mrb[0].mxu0
    %v513 = vpop.f32.mrb[0].mxu0
    %v514 = vadd.f32 0.0, %v513
    %v515 = vpop.f32.mrb[0].mxu0
    %516 = vmatprep.mubr.bf16.mxu0 0
    %517 = vmatmul.mubr.bf16.gmra.mrb[0].mxu0 %v304
    %v518 = vpop.f32.mrb[0].mxu0
    %v519 = vadd.f32 0.0, %v518
    %v520 = vpop.f32.mrb[0].mxu0
    %v521 = vpop.f32.mrb[0].mxu0
    %v522 = vadd.f32 0.0, %v521
    %v523 = vpop.f32.mrb[0].mxu0
    %524 = vmatprep.mubr.bf16.mxu0 0
    %525 = vmatmul.mubr.bf16.gmra.mrb[0].mxu0 %v307
    %v526 = vpop.f32.mrb[0].mxu0
    %v527 = vadd.f32 0.0, %v526
    %v528 = vpop.f32.mrb[0].mxu0
    %v529 = vpop.f32.mrb[0].mxu0
    %v530 = vadd.f32 0.0, %v529
    %v531 = vpop.f32.mrb[0].mxu0
    %532 = vmatprep.mubr.bf16.mxu0 0
    %533 = vmatmul.mubr.bf16.gmra.mrb[0].mxu0 %v310
    %v534 = vpop.f32.mrb[0].mxu0
    %v535 = vadd.f32 0.0, %v534
    %v536 = vpop.f32.mrb[0].mxu0
    %v537 = vpop.f32.mrb[0].mxu0
    %v538 = vadd.f32 0.0, %v537
    %v539 = vpop.f32.mrb[0].mxu0
    %540 = vmatprep.mubr.bf16.mxu0 0
    %541 = vmatmul.mubr.bf16.gmra.mrb[0].mxu0 %v313
    %v542 = vpop.f32.mrb[0].mxu0
    %v543 = vadd.f32 0.0, %v542
    %v544 = vpop.f32.mrb[0].mxu0
    %v545 = vpop.f32.mrb[0].mxu0
    %v546 = vadd.f32 0.0, %v545
    %v547 = vpop.f32.mrb[0].mxu0
    %548 = vmatprep.mubr.bf16.mxu0 0
    %549 = vmatmul.mubr.bf16.gmra.mrb[0].mxu0 %v316
    %v550 = vpop.f32.mrb[0].mxu0
    %v551 = vadd.f32 0.0, %v550
    %v552 = vpop.f32.mrb[0].mxu0
    %v553 = vpop.f32.mrb[0].mxu0
    %v554 = vadd.f32 0.0, %v553
    %v555 = vpop.f32.mrb[0].mxu0
    %556 = vmatprep.mubr.bf16.mxu0 0
    %557 = vmatmul.mubr.bf16.gmra.mrb[0].mxu0 %v319
    %v558 = vpop.f32.mrb[0].mxu0
    %v559 = vadd.f32 0.0, %v558
    %v560 = vpop.f32.mrb[0].mxu0
    %v561 = vpop.f32.mrb[0].mxu0
    %v562 = vadd.f32 0.0, %v561
    %v563 = vpop.f32.mrb[0].mxu0
    %564 = vmatprep.mubr.bf16.mxu0 0
    %565 = vmatmul.mubr.bf16.gmra.mrb[0].mxu0 %v322
    %v566 = vpop.f32.mrb[0].mxu0
    %v567 = vadd.f32 0.0, %v566
    %v568 = vpop.f32.mrb[0].mxu0
    %v569 = vpop.f32.mrb[0].mxu0
    %v570 = vadd.f32 0.0, %v569
    %v571 = vpop.f32.mrb[0].mxu0
    %572 = vmatprep.mubr.bf16.mxu0 0
    %573 = vmatmul.mubr.bf16.gmra.mrb[0].mxu0 %v325
    %v574 = vpop.f32.mrb[0].mxu0
    %v575 = vadd.f32 0.0, %v574
    %v576 = vpop.f32.mrb[0].mxu0
    %v577 = vpop.f32.mrb[0].mxu0
    %v578 = vadd.f32 0.0, %v577
    %v579 = vpop.f32.mrb[0].mxu0
    %580 = vmatprep.mubr.bf16.mxu0 0
    %581 = vmatmul.mubr.bf16.gmra.mrb[0].mxu0 %v328
    %v582 = vpop.f32.mrb[0].mxu0
    %v583 = vadd.f32 0.0, %v582
    %v584 = vpop.f32.mrb[0].mxu0
    %v585 = vpop.f32.mrb[0].mxu0
    %v586 = vadd.f32 0.0, %v585
    %v587 = vpop.f32.mrb[0].mxu0
    %588 = vmatprep.mubr.bf16.mxu0 0
    %589 = vmatmul.mubr.bf16.gmra.mrb[0].mxu0 %v331
    %v590 = vpop.f32.mrb[0].mxu0
    %v591 = vadd.f32 0.0, %v590
    %v592 = vpop.f32.mrb[0].mxu0
    %v593 = vpop.f32.mrb[0].mxu0
    %v594 = vadd.f32 0.0, %v593
    %v595 = vpop.f32.mrb[0].mxu0
    %596 = vmatprep.mubr.bf16.mxu0 0
    %597 = vmatmul.mubr.bf16.gmra.mrb[0].mxu0 %v334
    %v598 = vpop.f32.mrb[0].mxu0
    %v599 = vadd.f32 0.0, %v598
    %v600 = vpop.f32.mrb[0].mxu0
    %v601 = vpop.f32.mrb[0].mxu0
    %v602 = vadd.f32 0.0, %v601
    %v603 = vpop.f32.mrb[0].mxu0
    %604 = vmatprep.mubr.bf16.mxu0 0
    %605 = vmatmul.mubr.bf16.gmra.mrb[0].mxu0 %v337
    %v606 = vpop.f32.mrb[0].mxu0
    %v607 = vadd.f32 0.0, %v606
    %v608 = vpop.f32.mrb[0].mxu0
    %v609 = vpop.f32.mrb[0].mxu0
    %v610 = vadd.f32 0.0, %v609
    %v611 = vpop.f32.mrb[0].mxu0
    %612 = vmatprep.mubr.bf16.mxu0 0
    %613 = vmatmul.mubr.bf16.gmra.mrb[0].mxu0 %v340
    %v614 = vpop.f32.mrb[0].mxu0
    %v615 = vadd.f32 0.0, %v614
    %v616 = vpop.f32.mrb[0].mxu0
    %v617 = vpop.f32.mrb[0].mxu0
    %v618 = vadd.f32 0.0, %v617
    %v619 = vpop.f32.mrb[0].mxu0
    %620 = vmatprep.mubr.bf16.mxu0 0
    %621 = vmatmul.mubr.bf16.gmra.mrb[0].mxu0 %v343
    %v622 = vpop.f32.mrb[0].mxu0
    %v623 = vadd.f32 0.0, %v622
    %v624 = vpop.f32.mrb[0].mxu0
    %v625 = vpop.f32.mrb[0].mxu0
    %v626 = vadd.f32 0.0, %v625
    %v627 = vpop.f32.mrb[0].mxu0
    %628 = vmatprep.mubr.bf16.mxu0 0
    %629 = vmatmul.mubr.bf16.gmra.mrb[0].mxu0 %v346
    %v630 = vpop.f32.mrb[0].mxu0
    %v631 = vadd.f32 0.0, %v630
    %v632 = vpop.f32.mrb[0].mxu0
    %v633 = vpop.f32.mrb[0].mxu0
    %v634 = vadd.f32 0.0, %v633
    %v635 = vpop.f32.mrb[0].mxu0
    %636 = vdwg.mxu0
    %v637 = vmax.f32 %v383, 0.0
    %v638 = vmax.f32 %v386, 0.0
    %v639 = vmax.f32 %v391, 0.0
    %v640 = vmax.f32 %v394, 0.0
    %v641 = vmax.f32 %v399, 0.0
    %v642 = vmax.f32 %v402, 0.0
    %v643 = vmax.f32 %v407, 0.0
    %v644 = vmax.f32 %v410, 0.0
    %v645 = vmax.f32 %v415, 0.0
    %v646 = vmax.f32 %v418, 0.0
    %v647 = vmax.f32 %v423, 0.0
    %v648 = vmax.f32 %v426, 0.0
    %v649 = vmax.f32 %v431, 0.0
    %v650 = vmax.f32 %v434, 0.0
    %v651 = vmax.f32 %v439, 0.0
    %v652 = vmax.f32 %v442, 0.0
    %v653 = vmax.f32 %v447, 0.0
    %v654 = vmax.f32 %v450, 0.0
    %v655 = vmax.f32 %v455, 0.0
    %v656 = vmax.f32 %v458, 0.0
    %v657 = vmax.f32 %v463, 0.0
    %v658 = vmax.f32 %v466, 0.0
    %v659 = vmax.f32 %v471, 0.0
    %v660 = vmax.f32 %v474, 0.0
    %v661 = vmax.f32 %v479, 0.0
    %v662 = vmax.f32 %v482, 0.0
    %v663 = vmax.f32 %v487, 0.0
    %v664 = vmax.f32 %v490, 0.0
    %v665 = vmax.f32 %v495, 0.0
    %v666 = vmax.f32 %v498, 0.0
    %v667 = vmax.f32 %v503, 0.0
    %v668 = vmax.f32 %v506, 0.0
    %v669 = vmax.f32 %v511, 0.0
    %v670 = vmax.f32 %v514, 0.0
    %v671 = vmax.f32 %v519, 0.0
    %v672 = vmax.f32 %v522, 0.0
    %v673 = vmax.f32 %v527, 0.0
    %v674 = vmax.f32 %v530, 0.0
    %v675 = vmax.f32 %v535, 0.0
    %v676 = vmax.f32 %v538, 0.0
    %v677 = vmax.f32 %v543, 0.0
    %v678 = vmax.f32 %v546, 0.0
    %v679 = vmax.f32 %v551, 0.0
    %v680 = vmax.f32 %v554, 0.0
    %v681 = vmax.f32 %v559, 0.0
    %v682 = vmax.f32 %v562, 0.0
    %v683 = vmax.f32 %v567, 0.0
    %v684 = vmax.f32 %v570, 0.0
    %v685 = vmax.f32 %v575, 0.0
    %v686 = vmax.f32 %v578, 0.0
    %v687 = vmax.f32 %v583, 0.0
    %v688 = vmax.f32 %v586, 0.0
    %v689 = vmax.f32 %v591, 0.0
    %v690 = vmax.f32 %v594, 0.0
    %v691 = vmax.f32 %v599, 0.0
    %v692 = vmax.f32 %v602, 0.0
    %v693 = vmax.f32 %v607, 0.0
    %v694 = vmax.f32 %v610, 0.0
    %v695 = vmax.f32 %v615, 0.0
    %v696 = vmax.f32 %v618, 0.0
    %v697 = vmax.f32 %v623, 0.0
    %v698 = vmax.f32 %v626, 0.0
    %v699 = vmax.f32 %v631, 0.0
    %v700 = vmax.f32 %v634, 0.0
    %v701 = vpack.c.bf16 %v638, %v637
    %v702 = vpack.c.bf16 %v640, %v639
    %v703 = vpack.c.bf16 %v642, %v641
    %v704 = vpack.c.bf16 %v644, %v643
    %v705 = vpack.c.bf16 %v646, %v645
    %v706 = vpack.c.bf16 %v648, %v647
    %v707 = vpack.c.bf16 %v650, %v649
    %v708 = vpack.c.bf16 %v652, %v651
    %v709 = vpack.c.bf16 %v654, %v653
    %v710 = vpack.c.bf16 %v656, %v655
    %v711 = vpack.c.bf16 %v658, %v657
    %v712 = vpack.c.bf16 %v660, %v659
    %v713 = vpack.c.bf16 %v662, %v661
    %v714 = vpack.c.bf16 %v664, %v663
    %v715 = vpack.c.bf16 %v666, %v665
    %v716 = vpack.c.bf16 %v668, %v667
    %v717 = vpack.c.bf16 %v670, %v669
    %v718 = vpack.c.bf16 %v672, %v671
    %v719 = vpack.c.bf16 %v674, %v673
    %v720 = vpack.c.bf16 %v676, %v675
    %v721 = vpack.c.bf16 %v678, %v677
    %v722 = vpack.c.bf16 %v680, %v679
    %v723 = vpack.c.bf16 %v682, %v681
    %v724 = vpack.c.bf16 %v684, %v683
    %v725 = vpack.c.bf16 %v686, %v685
    %v726 = vpack.c.bf16 %v688, %v687
    %v727 = vpack.c.bf16 %v690, %v689
    %v728 = vpack.c.bf16 %v692, %v691
    %v729 = vpack.c.bf16 %v694, %v693
    %v730 = vpack.c.bf16 %v696, %v695
    %v731 = vpack.c.bf16 %v698, %v697
    %v732 = vpack.c.bf16 %v700, %v699
    %v733 = vld [vmem:[%s2] sm:$0xf]
    %v734 = vld [vmem:[%s2 + $0x4] sm:$0xf]
    %v735 = vld [vmem:[%s2 + $0x8] sm:$0xf]
    %v736 = vld [vmem:[%s2 + $0xc] sm:$0xf]
    %v737 = vld [vmem:[%s2 + $0x10] sm:$0xf]
    %v738 = vld [vmem:[%s2 + $0x14] sm:$0xf]
    %v739 = vld [vmem:[%s2 + $0x18] sm:$0xf]
    %v740 = vld [vmem:[%s2 + $0x1c] sm:$0xf]
    %v749 = vunpack.c.l.b16 %v733
    %v750 = vunpack.c.l.b16 %v734
    %v751 = vunpack.c.l.b16 %v735
    %v752 = vunpack.c.l.b16 %v736
    %v753 = vunpack.c.l.b16 %v737
    %v754 = vunpack.c.l.b16 %v738
    %v755 = vunpack.c.l.b16 %v739
    %v756 = vunpack.c.l.b16 %v740
    %v757 = vpack.c.b16 %v750, %v749
    %v758 = vpack.c.b16 %v752, %v751
    %v759 = vpack.c.b16 %v754, %v753
    %v760 = vpack.c.b16 %v756, %v755
    %vm765 = vcmask 523264
    %v767 = vsel %vm765, %v701, 0
    %v770 = vsel %vm765, %v702, 0
    %v773 = vsel %vm765, %v703, 0
    %v776 = vsel %vm765, %v704, 0
    %v779 = vsel %vm765, %v705, 0
    %v782 = vsel %vm765, %v706, 0
    %v785 = vsel %vm765, %v707, 0
    %v788 = vsel %vm765, %v708, 0
    %v791 = vsel %vm765, %v709, 0
    %v794 = vsel %vm765, %v710, 0
    %v797 = vsel %vm765, %v711, 0
    %v800 = vsel %vm765, %v712, 0
    %v803 = vsel %vm765, %v713, 0
    %v806 = vsel %vm765, %v714, 0
    %v809 = vsel %vm765, %v715, 0
    %v812 = vsel %vm765, %v716, 0
    %v815 = vsel %vm765, %v717, 0
    %v818 = vsel %vm765, %v718, 0
    %v821 = vsel %vm765, %v719, 0
    %v824 = vsel %vm765, %v720, 0
    %v827 = vsel %vm765, %v721, 0
    %v830 = vsel %vm765, %v722, 0
    %v833 = vsel %vm765, %v723, 0
    %v836 = vsel %vm765, %v724, 0
    %v839 = vsel %vm765, %v725, 0
    %v842 = vsel %vm765, %v726, 0
    %v845 = vsel %vm765, %v727, 0
    %v848 = vsel %vm765, %v728, 0
    %v851 = vsel %vm765, %v729, 0
    %v854 = vsel %vm765, %v730, 0
    %v857 = vsel %vm765, %v731, 0
    %v860 = vsel %vm765, %v732, 0
    %862 = vmatprep.subr.bf16.mxu0 0
    %863 = vmatpush1.bf16.msra.mxu0 %v757
    %864 = vmatprep.subr.bf16.mxu0 0
    %865 = vmatpush1.bf16.msra.mxu0 %v758
    %866 = vmatprep.subr.bf16.mxu0 0
    %867 = vmatpush1.bf16.msra.mxu0 %v759
    %868 = vmatprep.subr.bf16.mxu0 0
    %869 = vmatpush1.bf16.msra.mxu0 %v760
    %870 = vmatprep.subr.bf16.mxu0 0
    %871 = vmatpush1.bf16.msra.mxu0 0
    %872 = vmatprep.subr.bf16.mxu0 0
    %873 = vmatpush1.bf16.msra.mxu0 0
    %874 = vmatprep.subr.bf16.mxu0 0
    %875 = vmatpush1.bf16.msra.mxu0 0
    %876 = vmatprep.subr.bf16.mxu0 0
    %877 = vmatpush1.bf16.msra.mxu0 0
    %878 = vmatprep.subr.bf16.mxu0 0
    %879 = vmatpush1.bf16.msra.mxu0 0
    %880 = vmatprep.subr.bf16.mxu0 0
    %881 = vmatpush1.bf16.msra.mxu0 0
    %882 = vmatprep.subr.bf16.mxu0 0
    %883 = vmatpush1.bf16.msra.mxu0 0
    %884 = vmatprep.subr.bf16.mxu0 0
    %885 = vmatpush1.bf16.msra.mxu0 0
    %886 = vmatprep.subr.bf16.mxu0 0
    %887 = vmatpush1.bf16.msra.mxu0 0
    %888 = vmatprep.subr.bf16.mxu0 0
    %889 = vmatpush1.bf16.msra.mxu0 0
    %890 = vmatprep.subr.bf16.mxu0 0
    %891 = vmatpush1.bf16.msra.mxu0 0
    %892 = vmatprep.subr.bf16.mxu0 0
    %893 = vmatpush1.bf16.msra.mxu0 0
    %894 = vmatprep.mubr.bf16.mxu0 0
    %895 = vmatmul.mubr.bf16.gmra.mrb[0].mxu0 %v767
    %v896 = vpop.f32.mrb[0].mxu0
    %v897 = vadd.f32 0.0, %v896
    %v898 = vpop.f32.mrb[0].mxu0
    %v899 = vpop.f32.mrb[0].mxu0
    %v900 = vadd.f32 0.0, %v899
    %v901 = vpop.f32.mrb[0].mxu0
    %902 = vmatprep.mubr.bf16.mxu0 0
    %903 = vmatmul.mubr.bf16.gmra.mrb[0].mxu0 %v770
    %v904 = vpop.f32.mrb[0].mxu0
    %v905 = vadd.f32 0.0, %v904
    %v906 = vpop.f32.mrb[0].mxu0
    %v907 = vpop.f32.mrb[0].mxu0
    %v908 = vadd.f32 0.0, %v907
    %v909 = vpop.f32.mrb[0].mxu0
    %910 = vmatprep.mubr.bf16.mxu0 0
    %911 = vmatmul.mubr.bf16.gmra.mrb[0].mxu0 %v773
    %v912 = vpop.f32.mrb[0].mxu0
    %v913 = vadd.f32 0.0, %v912
    %v914 = vpop.f32.mrb[0].mxu0
    %v915 = vpop.f32.mrb[0].mxu0
    %v916 = vadd.f32 0.0, %v915
    %v917 = vpop.f32.mrb[0].mxu0
    %918 = vmatprep.mubr.bf16.mxu0 0
    %919 = vmatmul.mubr.bf16.gmra.mrb[0].mxu0 %v776
    %v920 = vpop.f32.mrb[0].mxu0
    %v921 = vadd.f32 0.0, %v920
    %v922 = vpop.f32.mrb[0].mxu0
    %v923 = vpop.f32.mrb[0].mxu0
    %v924 = vadd.f32 0.0, %v923
    %v925 = vpop.f32.mrb[0].mxu0
    %926 = vmatprep.mubr.bf16.mxu0 0
    %927 = vmatmul.mubr.bf16.gmra.mrb[0].mxu0 %v779
    %v928 = vpop.f32.mrb[0].mxu0
    %v929 = vadd.f32 0.0, %v928
    %v930 = vpop.f32.mrb[0].mxu0
    %v931 = vpop.f32.mrb[0].mxu0
    %v932 = vadd.f32 0.0, %v931
    %v933 = vpop.f32.mrb[0].mxu0
    %934 = vmatprep.mubr.bf16.mxu0 0
    %935 = vmatmul.mubr.bf16.gmra.mrb[0].mxu0 %v782
    %v936 = vpop.f32.mrb[0].mxu0
    %v937 = vadd.f32 0.0, %v936
    %v938 = vpop.f32.mrb[0].mxu0
    %v939 = vpop.f32.mrb[0].mxu0
    %v940 = vadd.f32 0.0, %v939
    %v941 = vpop.f32.mrb[0].mxu0
    %942 = vmatprep.mubr.bf16.mxu0 0
    %943 = vmatmul.mubr.bf16.gmra.mrb[0].mxu0 %v785
    %v944 = vpop.f32.mrb[0].mxu0
    %v945 = vadd.f32 0.0, %v944
    %v946 = vpop.f32.mrb[0].mxu0
    %v947 = vpop.f32.mrb[0].mxu0
    %v948 = vadd.f32 0.0, %v947
    %v949 = vpop.f32.mrb[0].mxu0
    %950 = vmatprep.mubr.bf16.mxu0 0
    %951 = vmatmul.mubr.bf16.gmra.mrb[0].mxu0 %v788
    %v952 = vpop.f32.mrb[0].mxu0
    %v953 = vadd.f32 0.0, %v952
    %v954 = vpop.f32.mrb[0].mxu0
    %v955 = vpop.f32.mrb[0].mxu0
    %v956 = vadd.f32 0.0, %v955
    %v957 = vpop.f32.mrb[0].mxu0
    %958 = vmatprep.mubr.bf16.mxu0 0
    %959 = vmatmul.mubr.bf16.gmra.mrb[0].mxu0 %v791
    %v960 = vpop.f32.mrb[0].mxu0
    %v961 = vadd.f32 0.0, %v960
    %v962 = vpop.f32.mrb[0].mxu0
    %v963 = vpop.f32.mrb[0].mxu0
    %v964 = vadd.f32 0.0, %v963
    %v965 = vpop.f32.mrb[0].mxu0
    %966 = vmatprep.mubr.bf16.mxu0 0
    %967 = vmatmul.mubr.bf16.gmra.mrb[0].mxu0 %v794
    %v968 = vpop.f32.mrb[0].mxu0
    %v969 = vadd.f32 0.0, %v968
    %v970 = vpop.f32.mrb[0].mxu0
    %v971 = vpop.f32.mrb[0].mxu0
    %v972 = vadd.f32 0.0, %v971
    %v973 = vpop.f32.mrb[0].mxu0
    %974 = vmatprep.mubr.bf16.mxu0 0
    %975 = vmatmul.mubr.bf16.gmra.mrb[0].mxu0 %v797
    %v976 = vpop.f32.mrb[0].mxu0
    %v977 = vadd.f32 0.0, %v976
    %v978 = vpop.f32.mrb[0].mxu0
    %v979 = vpop.f32.mrb[0].mxu0
    %v980 = vadd.f32 0.0, %v979
    %v981 = vpop.f32.mrb[0].mxu0
    %982 = vmatprep.mubr.bf16.mxu0 0
    %983 = vmatmul.mubr.bf16.gmra.mrb[0].mxu0 %v800
    %v984 = vpop.f32.mrb[0].mxu0
    %v985 = vadd.f32 0.0, %v984
    %v986 = vpop.f32.mrb[0].mxu0
    %v987 = vpop.f32.mrb[0].mxu0
    %v988 = vadd.f32 0.0, %v987
    %v989 = vpop.f32.mrb[0].mxu0
    %990 = vmatprep.mubr.bf16.mxu0 0
    %991 = vmatmul.mubr.bf16.gmra.mrb[0].mxu0 %v803
    %v992 = vpop.f32.mrb[0].mxu0
    %v993 = vadd.f32 0.0, %v992
    %v994 = vpop.f32.mrb[0].mxu0
    %v995 = vpop.f32.mrb[0].mxu0
    %v996 = vadd.f32 0.0, %v995
    %v997 = vpop.f32.mrb[0].mxu0
    %998 = vmatprep.mubr.bf16.mxu0 0
    %999 = vmatmul.mubr.bf16.gmra.mrb[0].mxu0 %v806
    %v1000 = vpop.f32.mrb[0].mxu0
    %v1001 = vadd.f32 0.0, %v1000
    %v1002 = vpop.f32.mrb[0].mxu0
    %v1003 = vpop.f32.mrb[0].mxu0
    %v1004 = vadd.f32 0.0, %v1003
    %v1005 = vpop.f32.mrb[0].mxu0
    %1006 = vmatprep.mubr.bf16.mxu0 0
    %1007 = vmatmul.mubr.bf16.gmra.mrb[0].mxu0 %v809
    %v1008 = vpop.f32.mrb[0].mxu0
    %v1009 = vadd.f32 0.0, %v1008
    %v1010 = vpop.f32.mrb[0].mxu0
    %v1011 = vpop.f32.mrb[0].mxu0
    %v1012 = vadd.f32 0.0, %v1011
    %v1013 = vpop.f32.mrb[0].mxu0
    %1014 = vmatprep.mubr.bf16.mxu0 0
    %1015 = vmatmul.mubr.bf16.gmra.mrb[0].mxu0 %v812
    %v1016 = vpop.f32.mrb[0].mxu0
    %v1017 = vadd.f32 0.0, %v1016
    %v1018 = vpop.f32.mrb[0].mxu0
    %v1019 = vpop.f32.mrb[0].mxu0
    %v1020 = vadd.f32 0.0, %v1019
    %v1021 = vpop.f32.mrb[0].mxu0
    %1022 = vmatprep.mubr.bf16.mxu0 0
    %1023 = vmatmul.mubr.bf16.gmra.mrb[0].mxu0 %v815
    %v1024 = vpop.f32.mrb[0].mxu0
    %v1025 = vadd.f32 0.0, %v1024
    %v1026 = vpop.f32.mrb[0].mxu0
    %v1027 = vpop.f32.mrb[0].mxu0
    %v1028 = vadd.f32 0.0, %v1027
    %v1029 = vpop.f32.mrb[0].mxu0
    %1030 = vmatprep.mubr.bf16.mxu0 0
    %1031 = vmatmul.mubr.bf16.gmra.mrb[0].mxu0 %v818
    %v1032 = vpop.f32.mrb[0].mxu0
    %v1033 = vadd.f32 0.0, %v1032
    %v1034 = vpop.f32.mrb[0].mxu0
    %v1035 = vpop.f32.mrb[0].mxu0
    %v1036 = vadd.f32 0.0, %v1035
    %v1037 = vpop.f32.mrb[0].mxu0
    %1038 = vmatprep.mubr.bf16.mxu0 0
    %1039 = vmatmul.mubr.bf16.gmra.mrb[0].mxu0 %v821
    %v1040 = vpop.f32.mrb[0].mxu0
    %v1041 = vadd.f32 0.0, %v1040
    %v1042 = vpop.f32.mrb[0].mxu0
    %v1043 = vpop.f32.mrb[0].mxu0
    %v1044 = vadd.f32 0.0, %v1043
    %v1045 = vpop.f32.mrb[0].mxu0
    %1046 = vmatprep.mubr.bf16.mxu0 0
    %1047 = vmatmul.mubr.bf16.gmra.mrb[0].mxu0 %v824
    %v1048 = vpop.f32.mrb[0].mxu0
    %v1049 = vadd.f32 0.0, %v1048
    %v1050 = vpop.f32.mrb[0].mxu0
    %v1051 = vpop.f32.mrb[0].mxu0
    %v1052 = vadd.f32 0.0, %v1051
    %v1053 = vpop.f32.mrb[0].mxu0
    %1054 = vmatprep.mubr.bf16.mxu0 0
    %1055 = vmatmul.mubr.bf16.gmra.mrb[0].mxu0 %v827
    %v1056 = vpop.f32.mrb[0].mxu0
    %v1057 = vadd.f32 0.0, %v1056
    %v1058 = vpop.f32.mrb[0].mxu0
    %v1059 = vpop.f32.mrb[0].mxu0
    %v1060 = vadd.f32 0.0, %v1059
    %v1061 = vpop.f32.mrb[0].mxu0
    %1062 = vmatprep.mubr.bf16.mxu0 0
    %1063 = vmatmul.mubr.bf16.gmra.mrb[0].mxu0 %v830
    %v1064 = vpop.f32.mrb[0].mxu0
    %v1065 = vadd.f32 0.0, %v1064
    %v1066 = vpop.f32.mrb[0].mxu0
    %v1067 = vpop.f32.mrb[0].mxu0
    %v1068 = vadd.f32 0.0, %v1067
    %v1069 = vpop.f32.mrb[0].mxu0
    %1070 = vmatprep.mubr.bf16.mxu0 0
    %1071 = vmatmul.mubr.bf16.gmra.mrb[0].mxu0 %v833
    %v1072 = vpop.f32.mrb[0].mxu0
    %v1073 = vadd.f32 0.0, %v1072
    %v1074 = vpop.f32.mrb[0].mxu0
    %v1075 = vpop.f32.mrb[0].mxu0
    %v1076 = vadd.f32 0.0, %v1075
    %v1077 = vpop.f32.mrb[0].mxu0
    %1078 = vmatprep.mubr.bf16.mxu0 0
    %1079 = vmatmul.mubr.bf16.gmra.mrb[0].mxu0 %v836
    %v1080 = vpop.f32.mrb[0].mxu0
    %v1081 = vadd.f32 0.0, %v1080
    %v1082 = vpop.f32.mrb[0].mxu0
    %v1083 = vpop.f32.mrb[0].mxu0
    %v1084 = vadd.f32 0.0, %v1083
    %v1085 = vpop.f32.mrb[0].mxu0
    %1086 = vmatprep.mubr.bf16.mxu0 0
    %1087 = vmatmul.mubr.bf16.gmra.mrb[0].mxu0 %v839
    %v1088 = vpop.f32.mrb[0].mxu0
    %v1089 = vadd.f32 0.0, %v1088
    %v1090 = vpop.f32.mrb[0].mxu0
    %v1091 = vpop.f32.mrb[0].mxu0
    %v1092 = vadd.f32 0.0, %v1091
    %v1093 = vpop.f32.mrb[0].mxu0
    %1094 = vmatprep.mubr.bf16.mxu0 0
    %1095 = vmatmul.mubr.bf16.gmra.mrb[0].mxu0 %v842
    %v1096 = vpop.f32.mrb[0].mxu0
    %v1097 = vadd.f32 0.0, %v1096
    %v1098 = vpop.f32.mrb[0].mxu0
    %v1099 = vpop.f32.mrb[0].mxu0
    %v1100 = vadd.f32 0.0, %v1099
    %v1101 = vpop.f32.mrb[0].mxu0
    %1102 = vmatprep.mubr.bf16.mxu0 0
    %1103 = vmatmul.mubr.bf16.gmra.mrb[0].mxu0 %v845
    %v1104 = vpop.f32.mrb[0].mxu0
    %v1105 = vadd.f32 0.0, %v1104
    %v1106 = vpop.f32.mrb[0].mxu0
    %v1107 = vpop.f32.mrb[0].mxu0
    %v1108 = vadd.f32 0.0, %v1107
    %v1109 = vpop.f32.mrb[0].mxu0
    %1110 = vmatprep.mubr.bf16.mxu0 0
    %1111 = vmatmul.mubr.bf16.gmra.mrb[0].mxu0 %v848
    %v1112 = vpop.f32.mrb[0].mxu0
    %v1113 = vadd.f32 0.0, %v1112
    %v1114 = vpop.f32.mrb[0].mxu0
    %v1115 = vpop.f32.mrb[0].mxu0
    %v1116 = vadd.f32 0.0, %v1115
    %v1117 = vpop.f32.mrb[0].mxu0
    %1118 = vmatprep.mubr.bf16.mxu0 0
    %1119 = vmatmul.mubr.bf16.gmra.mrb[0].mxu0 %v851
    %v1120 = vpop.f32.mrb[0].mxu0
    %v1121 = vadd.f32 0.0, %v1120
    %v1122 = vpop.f32.mrb[0].mxu0
    %v1123 = vpop.f32.mrb[0].mxu0
    %v1124 = vadd.f32 0.0, %v1123
    %v1125 = vpop.f32.mrb[0].mxu0
    %1126 = vmatprep.mubr.bf16.mxu0 0
    %1127 = vmatmul.mubr.bf16.gmra.mrb[0].mxu0 %v854
    %v1128 = vpop.f32.mrb[0].mxu0
    %v1129 = vadd.f32 0.0, %v1128
    %v1130 = vpop.f32.mrb[0].mxu0
    %v1131 = vpop.f32.mrb[0].mxu0
    %v1132 = vadd.f32 0.0, %v1131
    %v1133 = vpop.f32.mrb[0].mxu0
    %1134 = vmatprep.mubr.bf16.mxu0 0
    %1135 = vmatmul.mubr.bf16.gmra.mrb[0].mxu0 %v857
    %v1136 = vpop.f32.mrb[0].mxu0
    %v1137 = vadd.f32 0.0, %v1136
    %v1138 = vpop.f32.mrb[0].mxu0
    %v1139 = vpop.f32.mrb[0].mxu0
    %v1140 = vadd.f32 0.0, %v1139
    %v1141 = vpop.f32.mrb[0].mxu0
    %1142 = vmatprep.mubr.bf16.mxu0 0
    %1143 = vmatmul.mubr.bf16.gmra.mrb[0].mxu0 %v860
    %v1144 = vpop.f32.mrb[0].mxu0
    %v1145 = vadd.f32 0.0, %v1144
    %v1146 = vpop.f32.mrb[0].mxu0
    %v1147 = vpop.f32.mrb[0].mxu0
    %v1148 = vadd.f32 0.0, %v1147
    %v1149 = vpop.f32.mrb[0].mxu0
    %1150 = vdwg.mxu0
    %v1151 = vmax.f32 %v897, 0.0
    %v1152 = vmax.f32 %v900, 0.0
    %v1153 = vmax.f32 %v905, 0.0
    %v1154 = vmax.f32 %v908, 0.0
    %v1155 = vmax.f32 %v913, 0.0
    %v1156 = vmax.f32 %v916, 0.0
    %v1157 = vmax.f32 %v921, 0.0
    %v1158 = vmax.f32 %v924, 0.0
    %v1159 = vmax.f32 %v929, 0.0
    %v1160 = vmax.f32 %v932, 0.0
    %v1161 = vmax.f32 %v937, 0.0
    %v1162 = vmax.f32 %v940, 0.0
    %v1163 = vmax.f32 %v945, 0.0
    %v1164 = vmax.f32 %v948, 0.0
    %v1165 = vmax.f32 %v953, 0.0
    %v1166 = vmax.f32 %v956, 0.0
    %v1167 = vmax.f32 %v961, 0.0
    %v1168 = vmax.f32 %v964, 0.0
    %v1169 = vmax.f32 %v969, 0.0
    %v1170 = vmax.f32 %v972, 0.0
    %v1171 = vmax.f32 %v977, 0.0
    %v1172 = vmax.f32 %v980, 0.0
    %v1173 = vmax.f32 %v985, 0.0
    %v1174 = vmax.f32 %v988, 0.0
    %v1175 = vmax.f32 %v993, 0.0
    %v1176 = vmax.f32 %v996, 0.0
    %v1177 = vmax.f32 %v1001, 0.0
    %v1178 = vmax.f32 %v1004, 0.0
    %v1179 = vmax.f32 %v1009, 0.0
    %v1180 = vmax.f32 %v1012, 0.0
    %v1181 = vmax.f32 %v1017, 0.0
    %v1182 = vmax.f32 %v1020, 0.0
    %v1183 = vmax.f32 %v1025, 0.0
    %v1184 = vmax.f32 %v1028, 0.0
    %v1185 = vmax.f32 %v1033, 0.0
    %v1186 = vmax.f32 %v1036, 0.0
    %v1187 = vmax.f32 %v1041, 0.0
    %v1188 = vmax.f32 %v1044, 0.0
    %v1189 = vmax.f32 %v1049, 0.0
    %v1190 = vmax.f32 %v1052, 0.0
    %v1191 = vmax.f32 %v1057, 0.0
    %v1192 = vmax.f32 %v1060, 0.0
    %v1193 = vmax.f32 %v1065, 0.0
    %v1194 = vmax.f32 %v1068, 0.0
    %v1195 = vmax.f32 %v1073, 0.0
    %v1196 = vmax.f32 %v1076, 0.0
    %v1197 = vmax.f32 %v1081, 0.0
    %v1198 = vmax.f32 %v1084, 0.0
    %v1199 = vmax.f32 %v1089, 0.0
    %v1200 = vmax.f32 %v1092, 0.0
    %v1201 = vmax.f32 %v1097, 0.0
    %v1202 = vmax.f32 %v1100, 0.0
    %v1203 = vmax.f32 %v1105, 0.0
    %v1204 = vmax.f32 %v1108, 0.0
    %v1205 = vmax.f32 %v1113, 0.0
    %v1206 = vmax.f32 %v1116, 0.0
    %v1207 = vmax.f32 %v1121, 0.0
    %v1208 = vmax.f32 %v1124, 0.0
    %v1209 = vmax.f32 %v1129, 0.0
    %v1210 = vmax.f32 %v1132, 0.0
    %v1211 = vmax.f32 %v1137, 0.0
    %v1212 = vmax.f32 %v1140, 0.0
    %v1213 = vmax.f32 %v1145, 0.0
    %v1214 = vmax.f32 %v1148, 0.0
    %v1215 = vpack.c.bf16 %v1152, %v1151
    %v1216 = vpack.c.bf16 %v1154, %v1153
    %v1217 = vpack.c.bf16 %v1156, %v1155
    %v1218 = vpack.c.bf16 %v1158, %v1157
    %v1219 = vpack.c.bf16 %v1160, %v1159
    %v1220 = vpack.c.bf16 %v1162, %v1161
    %v1221 = vpack.c.bf16 %v1164, %v1163
    %v1222 = vpack.c.bf16 %v1166, %v1165
    %v1223 = vpack.c.bf16 %v1168, %v1167
    %v1224 = vpack.c.bf16 %v1170, %v1169
    %v1225 = vpack.c.bf16 %v1172, %v1171
    %v1226 = vpack.c.bf16 %v1174, %v1173
    %v1227 = vpack.c.bf16 %v1176, %v1175
    %v1228 = vpack.c.bf16 %v1178, %v1177
    %v1229 = vpack.c.bf16 %v1180, %v1179
    %v1230 = vpack.c.bf16 %v1182, %v1181
    %v1231 = vpack.c.bf16 %v1184, %v1183
    %v1232 = vpack.c.bf16 %v1186, %v1185
    %v1233 = vpack.c.bf16 %v1188, %v1187
    %v1234 = vpack.c.bf16 %v1190, %v1189
    %v1235 = vpack.c.bf16 %v1192, %v1191
    %v1236 = vpack.c.bf16 %v1194, %v1193
    %v1237 = vpack.c.bf16 %v1196, %v1195
    %v1238 = vpack.c.bf16 %v1198, %v1197
    %v1239 = vpack.c.bf16 %v1200, %v1199
    %v1240 = vpack.c.bf16 %v1202, %v1201
    %v1241 = vpack.c.bf16 %v1204, %v1203
    %v1242 = vpack.c.bf16 %v1206, %v1205
    %v1243 = vpack.c.bf16 %v1208, %v1207
    %v1244 = vpack.c.bf16 %v1210, %v1209
    %v1245 = vpack.c.bf16 %v1212, %v1211
    %v1246 = vpack.c.bf16 %v1214, %v1213
    %v1247 = vld [vmem:[%s3] sm:$0xf]
    %v1248 = vld [vmem:[%s3 + $0x4] sm:$0xf]
    %v1249 = vld [vmem:[%s3 + $0x8] sm:$0xf]
    %v1250 = vld [vmem:[%s3 + $0xc] sm:$0xf]
    %v1251 = vld [vmem:[%s3 + $0x10] sm:$0xf]
    %v1252 = vld [vmem:[%s3 + $0x14] sm:$0xf]
    %v1253 = vld [vmem:[%s3 + $0x18] sm:$0xf]
    %v1254 = vld [vmem:[%s3 + $0x1c] sm:$0xf]
    %v1263 = vunpack.c.l.b16 %v1247
    %v1264 = vunpack.c.l.b16 %v1248
    %v1265 = vunpack.c.l.b16 %v1249
    %v1266 = vunpack.c.l.b16 %v1250
    %v1267 = vunpack.c.l.b16 %v1251
    %v1268 = vunpack.c.l.b16 %v1252
    %v1269 = vunpack.c.l.b16 %v1253
    %v1270 = vunpack.c.l.b16 %v1254
    %v1271 = vpack.c.b16 %v1264, %v1263
    %v1272 = vpack.c.b16 %v1266, %v1265
    %v1273 = vpack.c.b16 %v1268, %v1267
    %v1274 = vpack.c.b16 %v1270, %v1269
    %1279 = vxpose.xlu0.c.b16.start [1/8] %v1271, 128
    %1280 = vxpose.xlu0.c.b16.cont [2/8] %v1272, 128
    %1281 = vxpose.xlu0.c.b16.cont [3/8] %v1273, 128
    %1282 = vxpose.xlu0.c.b16.cont [4/8] %v1274, 128
    %1283 = vxpose.xlu0.c.b16.cont [5/8] 0, 128
    %1284 = vxpose.xlu0.c.b16.cont [6/8] 0, 128
    %1285 = vxpose.xlu0.c.b16.cont [7/8] 0, 128
    %1286 = vxpose.xlu0.c.b16.end [8/8] 0, 128
    %v1287 = vpop.trf.xlu0
    %v1288 = vpop.trf.xlu0
    %v1289 = vpop.trf.xlu0
    %v1290 = vpop.trf.xlu0
    %v1291 = vpop.trf.xlu0
    %v1292 = vpop.trf.xlu0
    %v1293 = vpop.trf.xlu0
    %v1294 = vpop.trf.xlu0
    %v1296 = vsel %vm765, %v1287, 0
    %v1299 = vsel %vm765, %v1215, 0
    %v1302 = vsel %vm765, %v1216, 0
    %v1305 = vsel %vm765, %v1217, 0
    %v1308 = vsel %vm765, %v1218, 0
    %v1311 = vsel %vm765, %v1219, 0
    %v1314 = vsel %vm765, %v1220, 0
    %v1317 = vsel %vm765, %v1221, 0
    %v1320 = vsel %vm765, %v1222, 0
    %v1323 = vsel %vm765, %v1223, 0
    %v1326 = vsel %vm765, %v1224, 0
    %v1329 = vsel %vm765, %v1225, 0
    %v1332 = vsel %vm765, %v1226, 0
    %v1335 = vsel %vm765, %v1227, 0
    %v1338 = vsel %vm765, %v1228, 0
    %v1341 = vsel %vm765, %v1229, 0
    %v1344 = vsel %vm765, %v1230, 0
    %v1347 = vsel %vm765, %v1231, 0
    %v1350 = vsel %vm765, %v1232, 0
    %v1353 = vsel %vm765, %v1233, 0
    %v1356 = vsel %vm765, %v1234, 0
    %v1359 = vsel %vm765, %v1235, 0
    %v1362 = vsel %vm765, %v1236, 0
    %v1365 = vsel %vm765, %v1237, 0
    %v1368 = vsel %vm765, %v1238, 0
    %v1371 = vsel %vm765, %v1239, 0
    %v1374 = vsel %vm765, %v1240, 0
    %v1377 = vsel %vm765, %v1241, 0
    %v1380 = vsel %vm765, %v1242, 0
    %v1383 = vsel %vm765, %v1243, 0
    %v1386 = vsel %vm765, %v1244, 0
    %v1389 = vsel %vm765, %v1245, 0
    %v1392 = vsel %vm765, %v1246, 0
    %1394 = vmatprep.subr.bf16.mxu0 0
    %1395 = vmatpush1.bf16.xpose.msra.mxu0 %v1299
    %1396 = vmatprep.subr.bf16.mxu0 0
    %1397 = vmatpush1.bf16.xpose.msra.mxu0 %v1302
    %1398 = vmatprep.subr.bf16.mxu0 0
    %1399 = vmatpush1.bf16.xpose.msra.mxu0 %v1305
    %1400 = vmatprep.subr.bf16.mxu0 0
    %1401 = vmatpush1.bf16.xpose.msra.mxu0 %v1308
    %1402 = vmatprep.subr.bf16.mxu0 0
    %1403 = vmatpush1.bf16.xpose.msra.mxu0 %v1311
    %1404 = vmatprep.subr.bf16.mxu0 0
    %1405 = vmatpush1.bf16.xpose.msra.mxu0 %v1314
    %1406 = vmatprep.subr.bf16.mxu0 0
    %1407 = vmatpush1.bf16.xpose.msra.mxu0 %v1317
    %1408 = vmatprep.subr.bf16.mxu0 0
    %1409 = vmatpush1.bf16.xpose.msra.mxu0 %v1320
    %1410 = vmatprep.subr.bf16.mxu0 0
    %1411 = vmatpush1.bf16.xpose.msra.mxu0 %v1323
    %1412 = vmatprep.subr.bf16.mxu0 0
    %1413 = vmatpush1.bf16.xpose.msra.mxu0 %v1326
    %1414 = vmatprep.subr.bf16.mxu0 0
    %1415 = vmatpush1.bf16.xpose.msra.mxu0 %v1329
    %1416 = vmatprep.subr.bf16.mxu0 0
    %1417 = vmatpush1.bf16.xpose.msra.mxu0 %v1332
    %1418 = vmatprep.subr.bf16.mxu0 0
    %1419 = vmatpush1.bf16.xpose.msra.mxu0 %v1335
    %1420 = vmatprep.subr.bf16.mxu0 0
    %1421 = vmatpush1.bf16.xpose.msra.mxu0 %v1338
    %1422 = vmatprep.subr.bf16.mxu0 0
    %1423 = vmatpush1.bf16.xpose.msra.mxu0 %v1341
    %1424 = vmatprep.subr.bf16.mxu0 0
    %1425 = vmatpush1.bf16.xpose.msra.mxu0 %v1344
    %1426 = vmatprep.mubr.bf16.mxu0 0
    %1427 = vmatmul.mubr.bf16.gmra.mrb[0].mxu0 %v1296
    %v1428 = vpop.f32.mrb[0].mxu0
    %v1429 = vadd.f32 0.0, %v1428
    %v1430 = vpop.f32.mrb[0].mxu0
    %v1431 = vadd.f32 0.0, %v1430
    %v1432 = vpop.f32.mrb[0].mxu0
    %v1433 = vpop.f32.mrb[0].mxu0
    %1434 = vdwg.mxu0
    %1435 = vmatprep.subr.bf16.mxu0 0
    %1436 = vmatpush1.bf16.xpose.msra.mxu0 %v1347
    %1437 = vmatprep.subr.bf16.mxu0 0
    %1438 = vmatpush1.bf16.xpose.msra.mxu0 %v1350
    %1439 = vmatprep.subr.bf16.mxu0 0
    %1440 = vmatpush1.bf16.xpose.msra.mxu0 %v1353
    %1441 = vmatprep.subr.bf16.mxu0 0
    %1442 = vmatpush1.bf16.xpose.msra.mxu0 %v1356
    %1443 = vmatprep.subr.bf16.mxu0 0
    %1444 = vmatpush1.bf16.xpose.msra.mxu0 %v1359
    %1445 = vmatprep.subr.bf16.mxu0 0
    %1446 = vmatpush1.bf16.xpose.msra.mxu0 %v1362
    %1447 = vmatprep.subr.bf16.mxu0 0
    %1448 = vmatpush1.bf16.xpose.msra.mxu0 %v1365
    %1449 = vmatprep.subr.bf16.mxu0 0
    %1450 = vmatpush1.bf16.xpose.msra.mxu0 %v1368
    %1451 = vmatprep.subr.bf16.mxu0 0
    %1452 = vmatpush1.bf16.xpose.msra.mxu0 %v1371
    %1453 = vmatprep.subr.bf16.mxu0 0
    %1454 = vmatpush1.bf16.xpose.msra.mxu0 %v1374
    %1455 = vmatprep.subr.bf16.mxu0 0
    %1456 = vmatpush1.bf16.xpose.msra.mxu0 %v1377
    %1457 = vmatprep.subr.bf16.mxu0 0
    %1458 = vmatpush1.bf16.xpose.msra.mxu0 %v1380
    %1459 = vmatprep.subr.bf16.mxu0 0
    %1460 = vmatpush1.bf16.xpose.msra.mxu0 %v1383
    %1461 = vmatprep.subr.bf16.mxu0 0
    %1462 = vmatpush1.bf16.xpose.msra.mxu0 %v1386
    %1463 = vmatprep.subr.bf16.mxu0 0
    %1464 = vmatpush1.bf16.xpose.msra.mxu0 %v1389
    %1465 = vmatprep.subr.bf16.mxu0 0
    %1466 = vmatpush1.bf16.xpose.msra.mxu0 %v1392
    %1467 = vmatprep.mubr.bf16.mxu0 0
    %1468 = vmatmul.mubr.bf16.gmra.mrb[0].mxu0 %v1296
    %v1469 = vpop.f32.mrb[0].mxu0
    %v1470 = vadd.f32 0.0, %v1469
    %v1471 = vpop.f32.mrb[0].mxu0
    %v1472 = vadd.f32 0.0, %v1471
    %v1473 = vpop.f32.mrb[0].mxu0
    %v1474 = vpop.f32.mrb[0].mxu0
    %1475 = vdwg.mxu0
    %v1476 = vxor.u32 %v1429, 2147483648
    %v1477 = vxor.u32 %v1431, 2147483648
    %v1478 = vxor.u32 %v1470, 2147483648
    %v1479 = vxor.u32 %v1472, 2147483648
    %v1480 = vmul.f32 %v1476, 1.442695
    %v1481 = vpow.pop %v1480
    %v1482 = vmul.f32 %v1477, 1.442695
    %v1483 = vpow.pop %v1482
    %v1484 = vmul.f32 %v1478, 1.442695
    %v1485 = vpow.pop %v1484
    %v1486 = vmul.f32 %v1479, 1.442695
    %v1487 = vpow.pop %v1486
    %v1488 = vadd.f32 %v1481, 1.0
    %v1489 = vadd.f32 %v1483, 1.0
    %v1490 = vadd.f32 %v1485, 1.0
    %v1491 = vadd.f32 %v1487, 1.0
    %v1492 = vrcp.pop %v1488
    %v1493 = vmul.f32 1.0, %v1492
    %v1494 = vrcp.pop %v1489
    %v1495 = vmul.f32 1.0, %v1494
    %v1496 = vrcp.pop %v1490
    %v1497 = vmul.f32 1.0, %v1496
    %v1498 = vrcp.pop %v1491
    %v1499 = vmul.f32 1.0, %v1498
    %v1504 = vcombine.low %v1493, %v1495
    %v1505 = vcombine.low %v1497, %v1499
    %1508 = vst [vmem:[#allocation2] sm:$0x77] %v1504
    %1509 = vst [vmem:[#allocation2 + $0x8] sm:$0x77] %v1505
    // Predicated region
    $region18: #{tpu_custom_call.1} parent=1 // pred_check
      _
    $region19: #{tpu_custom_call.1} parent=1 // pred_check_branch
      %1511 = sbr.rel (0) target = $region21
    $region20: #{tpu_custom_call.1} parent=1 // pred_region
      %s1513 = ssub.s32 256, 256
      %1514 = vsyncadd [#allocation3], %s1513
      %s1516 = sshll.u32 [#allocation2], 4
      %s1517 = int_to_ptr.vmem [resolvable:$true] %s1516
      %1519 = dma.vmem_to_hbm [thread:$0]  %s1517, 256, %s4, [#allocation3]
    $region21: #{tpu_custom_call.1} parent=1 // pred_fallthru
      _
    // Predicated region
    $region22: #{tpu_custom_call.1} parent=1 // pred_check
      _
    $region23: #{tpu_custom_call.1} parent=1 // pred_check_branch
      %1521 = sbr.rel (0) target = $region25
    $region24: #{tpu_custom_call.1} parent=1 // pred_region
      %1522 = dma.done [#allocation3], 256
    $region25: #{tpu_custom_call.1} parent=1 // pred_fallthru
      _
    %1523 = vsyncpa [#allocation3], 1

</llo_original>
